<compile_context>
chip_gen: v6e
topology: v6e:2x2x1
jax: 0.10.0
libtpu: 0.0.40
codegen_flags: <defaults>
</compile_context>

<pallas_src>
import functools

import numpy as np

import jax
import jax.numpy as jnp
from jax.experimental import pallas as pl
from jax.experimental.pallas import tpu as pltpu


def _grayscott_kernel(masks_ref, a_ref, s_ref, da_ref, ds_ref, ra_ref, rs_ref,
                      *, shift_lf, shift_rt, shift_up, shift_dn,
                      da_scale, ds_scale, mu_rho, rho):
    """One (Bt, H*W) block of Gray-Scott JVP residuals.

    a/s/da/ds/ra/rs refs are (Bt, H*W) float32; each row is an independent
    flattened (H, W) plane.  masks_ref is (4, H*W) float32 with rows
    [is_left, is_right, is_top, is_bottom] edge indicators.
    `da_scale = DA/h^2`, `ds_scale = DS/h^2`, `mu_rho = mu + rho`.
    """
    A = a_ref[...]
    S = s_ref[...]
    dA = da_ref[...]
    dS = ds_ref[...]

    # Precomputed, loop-invariant (1, H*W) boundary masks (no iota/% here).
    is_left = masks_ref[0:1, :] != 0.0
    is_right = masks_ref[1:2, :] != 0.0
    is_top = masks_ref[2:3, :] != 0.0
    is_bot = masks_ref[3:4, :] != 0.0

    # Linearity of the Laplacian: lap(A) + lap(dA) == lap(A + dA).
    P = A + dA
    Q = S + dS

    def lap(x):
        # Neighbor values via XLU lane rotations; replicate ("edge") boundary
        # handled by selecting the center value on the corresponding edge.
        up = jnp.where(is_top, x, pltpu.roll(x, shift=shift_up, axis=1))
        dn = jnp.where(is_bot, x, pltpu.roll(x, shift=shift_dn, axis=1))
        lf = jnp.where(is_left, x, pltpu.roll(x, shift=shift_lf, axis=1))
        rt = jnp.where(is_right, x, pltpu.roll(x, shift=shift_rt, axis=1))
        return 4.0 * x - up - dn - lf - rt

    # Shared reaction term:  t = A^2*(S+dS) + 2*S*A*dA
    t = A * (A * Q + 2.0 * S * dA)

    # R_A = DA*lap(A+dA) + (mu+rho)*(A+dA) - t
    # R_S = DS*lap(S+dS) + rho*((S+dS) - 1) + t
    ra_ref[...] = da_scale * lap(P) + mu_rho * P - t
    rs_ref[...] = ds_scale * lap(Q) + rho * (Q - 1.0) + t


def _pick_block_batch(B, plane_bytes, target_bytes=2 << 20, min_steps=4):
    """Planes per grid step: ~target_bytes per input block, but keep enough
    grid steps for DMA/compute overlap and TensorCore sharding on v7x."""
    bt = max(1, target_bytes // plane_bytes)
    if B > 8:
        # At least `min_steps` grid steps when there is enough work.
        bt = min(bt, max(8, pl.cdiv(B, min_steps)))
        bt = max(8, (bt // 8) * 8)       # keep sublane-tileable blocks
    bt = min(bt, B)
    return int(max(1, bt))


def grayscott_hess_delta(A, S, delta_A, delta_S,
                         DA=0.00025, DS=0.0005, mu=0.065, rho=0.04, N=63):
    """JAX/Pallas equivalent of GrayScott_Hess_Delta.forward.

    A, S, delta_A, delta_S: (B, 1, H, W) float32 arrays (NCHW, C=1).
    Returns (R_A, R_S), each (B, 1, H, W).
    """
    h = 1.0 / (N - 1)
    inv_h2 = 1.0 / (h * h)

    B, C, H, W = A.shape
    assert C == 1

    HW = H * W

    # Free, contiguous reshape to a lane-dense (B, H*W) layout.
    def flat(x):
        return x.reshape(B, HW)

    Af, Sf, dAf, dSf = flat(A), flat(S), flat(delta_A), flat(delta_S)

    # Precomputed edge masks (loop-invariant): rows are
    # [col==0, col==W-1, row==0, row==H-1] over the flattened (H, W) plane.
    col = np.arange(HW, dtype=np.int32) % W
    row = np.arange(HW, dtype=np.int32) // W
    masks = jnp.asarray(
        np.stack([col == 0, col == W - 1, row == 0, row == H - 1]
                 ).astype(np.float32))

    bt = _pick_block_batch(B, HW * 4)
    grid = (pl.cdiv(B, bt),)

    kernel = functools.partial(
        _grayscott_kernel,
        shift_lf=1 % HW,            # left neighbor : out[k] = x[k-1]
        shift_rt=(HW - 1) % HW,     # right neighbor: out[k] = x[k+1]
        shift_up=W % HW,            # row above     : out[k] = x[k-W]
        shift_dn=(HW - W) % HW,     # row below     : out[k] = x[k+W]
        da_scale=float(DA * inv_h2),
        ds_scale=float(DS * inv_h2),
        mu_rho=float(mu + rho),
        rho=float(rho),
    )

    spec = pl.BlockSpec((bt, HW), lambda i: (i, 0))
    mask_spec = pl.BlockSpec((4, HW), lambda i: (0, 0))

    R_A, R_S = pl.pallas_call(
        kernel,
        out_shape=(jax.ShapeDtypeStruct((B, HW), jnp.float32),
                   jax.ShapeDtypeStruct((B, HW), jnp.float32)),
        grid_spec=pltpu.PrefetchScalarGridSpec(
            num_scalar_prefetch=0,
            grid=grid,
            in_specs=[mask_spec, spec, spec, spec, spec],
            out_specs=[spec, spec],
        ),
        compiler_params=pltpu.CompilerParams(
            dimension_semantics=("parallel",),
            vmem_limit_bytes=48 * 1024 * 1024,
        ),
    )(masks, Af, Sf, dAf, dSf)

    return R_A.reshape(B, 1, H, W), R_S.reshape(B, 1, H, W)


def _reference(A, S, dA, dS, DA=0.00025, DS=0.0005, mu=0.065, rho=0.04, N=63):
    # Pure-JAX reference (mirrors the PyTorch module) for correctness check.
    h = 1.0 / (N - 1)
    inv_h2 = 1.0 / (h * h)

    def lap(x):
        xp = jnp.pad(x[:, 0], ((0, 0), (1, 1), (1, 1)), mode="edge")
        c = xp[:, 1:-1, 1:-1]
        out = (4.0 * c - xp[:, :-2, 1:-1] - xp[:, 2:, 1:-1]
               - xp[:, 1:-1, :-2] - xp[:, 1:-1, 2:]) * inv_h2
        return out[:, None]

    lap_A, lap_S, lap_dA, lap_dS = lap(A), lap(S), lap(dA), lap(dS)
    F_A = DA * lap_A - S * A ** 2 + (mu + rho) * A
    F_S = DS * lap_S + S * A ** 2 - rho * (1 - S)
    J_AA_dA = DA * lap_dA - 2 * dA * S * A + (mu + rho) * dA
    J_SS_dS = DS * lap_dS + (A ** 2 + rho) * dS
    J_AS_dS = -A ** 2 * dS
    J_SA_dA = 2 * S * A * dA
    return J_AA_dA + J_AS_dS + F_A, J_SA_dA + J_SS_dS + F_S


if __name__ == "__main__":
    key = jax.random.PRNGKey(0)
    k1, k2, k3, k4 = jax.random.split(key, 4)
    B, H, W = 2, 16, 16
    A = jax.random.uniform(k1, (B, 1, H, W), dtype=jnp.float32)
    S = jax.random.uniform(k2, (B, 1, H, W), dtype=jnp.float32)
    delta_A = jax.random.normal(k3, (B, 1, H, W), dtype=jnp.float32) * 0.01
    delta_S = jax.random.normal(k4, (B, 1, H, W), dtype=jnp.float32) * 0.01

    R_A, R_S = grayscott_hess_delta(A, S, delta_A, delta_S)
    jax.block_until_ready((R_A, R_S))

    R_A_ref, R_S_ref = _reference(A, S, delta_A, delta_S)
    assert jnp.allclose(R_A, R_A_ref, rtol=1e-5, atol=1e-3), (
        float(jnp.max(jnp.abs(R_A - R_A_ref))))
    assert jnp.allclose(R_S, R_S_ref, rtol=1e-5, atol=1e-3), (
        float(jnp.max(jnp.abs(R_S - R_S_ref))))

    print("KERNEL_OK")
</pallas_src>

<mosaic_0001>
module attributes {stable_mosaic.version = 11 : i64} {
  func.func @_grayscott_kernel(%arg0: i32, %arg1: memref<4x256xf32, #tpu.memory_space<vmem>>, %arg2: memref<2x256xf32, #tpu.memory_space<vmem>>, %arg3: memref<2x256xf32, #tpu.memory_space<vmem>>, %arg4: memref<2x256xf32, #tpu.memory_space<vmem>>, %arg5: memref<2x256xf32, #tpu.memory_space<vmem>>, %arg6: memref<2x256xf32, #tpu.memory_space<vmem>>, %arg7: memref<2x256xf32, #tpu.memory_space<vmem>>) attributes {dimension_semantics = [#tpu.dimension_semantics<parallel>], iteration_bounds = array<i64: 1>, scalar_prefetch = 0 : i64, scratch_operands = 0 : i64, tpu.core_type = #tpu.core_type<tc>, window_params = [{pipeline_mode = #tpu.pipeline_mode<synchronous>, transform_indices = @transform_0, window_bounds = array<i64: 4, 256>}, {transform_indices = @transform_1, window_bounds = array<i64: 2, 256>}, {transform_indices = @transform_2, window_bounds = array<i64: 2, 256>}, {transform_indices = @transform_3, window_bounds = array<i64: 2, 256>}, {transform_indices = @transform_4, window_bounds = array<i64: 2, 256>}, {transform_indices = @transform_5, window_bounds = array<i64: 2, 256>}, {transform_indices = @transform_6, window_bounds = array<i64: 2, 256>}]} {
    %c0 = arith.constant 0 : index
    %c0_0 = arith.constant 0 : index
    %0 = vector.load %arg2[%c0, %c0_0] : memref<2x256xf32, #tpu.memory_space<vmem>>, vector<2x256xf32>
    %c0_1 = arith.constant 0 : index
    %c0_2 = arith.constant 0 : index
    %1 = vector.load %arg3[%c0_1, %c0_2] : memref<2x256xf32, #tpu.memory_space<vmem>>, vector<2x256xf32>
    %c0_3 = arith.constant 0 : index
    %c0_4 = arith.constant 0 : index
    %2 = vector.load %arg4[%c0_3, %c0_4] : memref<2x256xf32, #tpu.memory_space<vmem>>, vector<2x256xf32>
    %c0_5 = arith.constant 0 : index
    %c0_6 = arith.constant 0 : index
    %3 = vector.load %arg5[%c0_5, %c0_6] : memref<2x256xf32, #tpu.memory_space<vmem>>, vector<2x256xf32>
    %c0_7 = arith.constant 0 : index
    %c0_8 = arith.constant 0 : index
    %4 = vector.load %arg1[%c0_7, %c0_8] : memref<4x256xf32, #tpu.memory_space<vmem>>, vector<1x256xf32>
    %cst = arith.constant 0.000000e+00 : f32
    %5 = vector.broadcast %cst : f32 to vector<1x256xf32>
    %6 = arith.cmpf one, %4, %5 : vector<1x256xf32>
    %c1 = arith.constant 1 : index
    %c0_9 = arith.constant 0 : index
    %7 = vector.load %arg1[%c1, %c0_9] : memref<4x256xf32, #tpu.memory_space<vmem>>, vector<1x256xf32>
    %cst_10 = arith.constant 0.000000e+00 : f32
    %8 = vector.broadcast %cst_10 : f32 to vector<1x256xf32>
    %9 = arith.cmpf one, %7, %8 : vector<1x256xf32>
    %c2 = arith.constant 2 : index
    %c0_11 = arith.constant 0 : index
    %10 = vector.load %arg1[%c2, %c0_11] : memref<4x256xf32, #tpu.memory_space<vmem>>, vector<1x256xf32>
    %cst_12 = arith.constant 0.000000e+00 : f32
    %11 = vector.broadcast %cst_12 : f32 to vector<1x256xf32>
    %12 = arith.cmpf one, %10, %11 : vector<1x256xf32>
    %c3 = arith.constant 3 : index
    %c0_13 = arith.constant 0 : index
    %13 = vector.load %arg1[%c3, %c0_13] : memref<4x256xf32, #tpu.memory_space<vmem>>, vector<1x256xf32>
    %cst_14 = arith.constant 0.000000e+00 : f32
    %14 = vector.broadcast %cst_14 : f32 to vector<1x256xf32>
    %15 = arith.cmpf one, %13, %14 : vector<1x256xf32>
    %16 = arith.addf %0, %2 : vector<2x256xf32>
    %17 = arith.addf %1, %3 : vector<2x256xf32>
    %18 = arith.mulf %0, %17 : vector<2x256xf32>
    %cst_15 = arith.constant 2.000000e+00 : f32
    %19 = vector.broadcast %cst_15 : f32 to vector<2x256xf32>
    %20 = arith.mulf %19, %1 : vector<2x256xf32>
    %21 = arith.mulf %20, %2 : vector<2x256xf32>
    %22 = arith.addf %18, %21 : vector<2x256xf32>
    %23 = arith.mulf %0, %22 : vector<2x256xf32>
    %c16_i32 = arith.constant 16 : i32
    %24 = tpu.dynamic_rotate %16 by %c16_i32 dim 1 : vector<2x256xf32>, i32 -> vector<2x256xf32>
    %25 = vector.shape_cast %12 : vector<1x256xi1> to vector<1x256xi1>
    %26 = vector.broadcast %25 : vector<1x256xi1> to vector<2x256xi1>
    %27 = arith.select %26, %16, %24 : vector<2x256xi1>, vector<2x256xf32>
    %c240_i32 = arith.constant 240 : i32
    %28 = tpu.dynamic_rotate %16 by %c240_i32 dim 1 : vector<2x256xf32>, i32 -> vector<2x256xf32>
    %29 = vector.shape_cast %15 : vector<1x256xi1> to vector<1x256xi1>
    %30 = vector.broadcast %29 : vector<1x256xi1> to vector<2x256xi1>
    %31 = arith.select %30, %16, %28 : vector<2x256xi1>, vector<2x256xf32>
    %c1_i32 = arith.constant 1 : i32
    %32 = tpu.dynamic_rotate %16 by %c1_i32 dim 1 : vector<2x256xf32>, i32 -> vector<2x256xf32>
    %33 = vector.shape_cast %6 : vector<1x256xi1> to vector<1x256xi1>
    %34 = vector.broadcast %33 : vector<1x256xi1> to vector<2x256xi1>
    %35 = arith.select %34, %16, %32 : vector<2x256xi1>, vector<2x256xf32>
    %c255_i32 = arith.constant 255 : i32
    %36 = tpu.dynamic_rotate %16 by %c255_i32 dim 1 : vector<2x256xf32>, i32 -> vector<2x256xf32>
    %37 = vector.shape_cast %9 : vector<1x256xi1> to vector<1x256xi1>
    %38 = vector.broadcast %37 : vector<1x256xi1> to vector<2x256xi1>
    %39 = arith.select %38, %16, %36 : vector<2x256xi1>, vector<2x256xf32>
    %cst_16 = arith.constant 4.000000e+00 : f32
    %40 = vector.broadcast %cst_16 : f32 to vector<2x256xf32>
    %41 = arith.mulf %40, %16 : vector<2x256xf32>
    %42 = arith.subf %41, %27 : vector<2x256xf32>
    %43 = arith.subf %42, %31 : vector<2x256xf32>
    %44 = arith.subf %43, %35 : vector<2x256xf32>
    %45 = arith.subf %44, %39 : vector<2x256xf32>
    %cst_17 = arith.constant 9.610000e-01 : f32
    %46 = vector.broadcast %cst_17 : f32 to vector<2x256xf32>
    %47 = arith.mulf %46, %45 : vector<2x256xf32>
    %cst_18 = arith.constant 1.050000e-01 : f32
    %48 = vector.broadcast %cst_18 : f32 to vector<2x256xf32>
    %49 = arith.mulf %48, %16 : vector<2x256xf32>
    %50 = arith.addf %47, %49 : vector<2x256xf32>
    %51 = arith.subf %50, %23 : vector<2x256xf32>
    %c0_19 = arith.constant 0 : index
    %c0_20 = arith.constant 0 : index
    %52 = vector.load %arg6[%c0_19, %c0_20] : memref<2x256xf32, #tpu.memory_space<vmem>>, vector<2x256xf32>
    tpu.vector_store %arg6[%c0_19, %c0_20], %51 {strides = array<i32>} : memref<2x256xf32, #tpu.memory_space<vmem>>, vector<2x256xf32>,
    %c16_i32_21 = arith.constant 16 : i32
    %53 = tpu.dynamic_rotate %17 by %c16_i32_21 dim 1 : vector<2x256xf32>, i32 -> vector<2x256xf32>
    %54 = vector.shape_cast %12 : vector<1x256xi1> to vector<1x256xi1>
    %55 = vector.broadcast %54 : vector<1x256xi1> to vector<2x256xi1>
    %56 = arith.select %55, %17, %53 : vector<2x256xi1>, vector<2x256xf32>
    %c240_i32_22 = arith.constant 240 : i32
    %57 = tpu.dynamic_rotate %17 by %c240_i32_22 dim 1 : vector<2x256xf32>, i32 -> vector<2x256xf32>
    %58 = vector.shape_cast %15 : vector<1x256xi1> to vector<1x256xi1>
    %59 = vector.broadcast %58 : vector<1x256xi1> to vector<2x256xi1>
    %60 = arith.select %59, %17, %57 : vector<2x256xi1>, vector<2x256xf32>
    %c1_i32_23 = arith.constant 1 : i32
    %61 = tpu.dynamic_rotate %17 by %c1_i32_23 dim 1 : vector<2x256xf32>, i32 -> vector<2x256xf32>
    %62 = vector.shape_cast %6 : vector<1x256xi1> to vector<1x256xi1>
    %63 = vector.broadcast %62 : vector<1x256xi1> to vector<2x256xi1>
    %64 = arith.select %63, %17, %61 : vector<2x256xi1>, vector<2x256xf32>
    %c255_i32_24 = arith.constant 255 : i32
    %65 = tpu.dynamic_rotate %17 by %c255_i32_24 dim 1 : vector<2x256xf32>, i32 -> vector<2x256xf32>
    %66 = vector.shape_cast %9 : vector<1x256xi1> to vector<1x256xi1>
    %67 = vector.broadcast %66 : vector<1x256xi1> to vector<2x256xi1>
    %68 = arith.select %67, %17, %65 : vector<2x256xi1>, vector<2x256xf32>
    %cst_25 = arith.constant 4.000000e+00 : f32
    %69 = vector.broadcast %cst_25 : f32 to vector<2x256xf32>
    %70 = arith.mulf %69, %17 : vector<2x256xf32>
    %71 = arith.subf %70, %56 : vector<2x256xf32>
    %72 = arith.subf %71, %60 : vector<2x256xf32>
    %73 = arith.subf %72, %64 : vector<2x256xf32>
    %74 = arith.subf %73, %68 : vector<2x256xf32>
    %cst_26 = arith.constant 1.922000e+00 : f32
    %75 = vector.broadcast %cst_26 : f32 to vector<2x256xf32>
    %76 = arith.mulf %75, %74 : vector<2x256xf32>
    %cst_27 = arith.constant 1.000000e+00 : f32
    %77 = vector.broadcast %cst_27 : f32 to vector<2x256xf32>
    %78 = arith.subf %17, %77 : vector<2x256xf32>
    %cst_28 = arith.constant 4.000000e-02 : f32
    %79 = vector.broadcast %cst_28 : f32 to vector<2x256xf32>
    %80 = arith.mulf %79, %78 : vector<2x256xf32>
    %81 = arith.addf %76, %80 : vector<2x256xf32>
    %82 = arith.addf %81, %23 : vector<2x256xf32>
    %c0_29 = arith.constant 0 : index
    %c0_30 = arith.constant 0 : index
    %83 = vector.load %arg7[%c0_29, %c0_30] : memref<2x256xf32, #tpu.memory_space<vmem>>, vector<2x256xf32>
    tpu.vector_store %arg7[%c0_29, %c0_30], %82 {strides = array<i32>} : memref<2x256xf32, #tpu.memory_space<vmem>>, vector<2x256xf32>,
    return
  }
  func.func @transform_0(%arg0: i32) -> (i32, i32) {
    %c0_i32 = arith.constant 0 : i32
    %c0_i32_0 = arith.constant 0 : i32
    %c0_i32_1 = arith.constant 0 : i32
    return %c0_i32, %c0_i32_0 : i32, i32
  }
  func.func @transform_1(%arg0: i32) -> (i32, i32) {
    %c0_i32 = arith.constant 0 : i32
    %c0_i32_0 = arith.constant 0 : i32
    return %arg0, %c0_i32 : i32, i32
  }
  func.func @transform_2(%arg0: i32) -> (i32, i32) {
    %c0_i32 = arith.constant 0 : i32
    %c0_i32_0 = arith.constant 0 : i32
    return %arg0, %c0_i32 : i32, i32
  }
  func.func @transform_3(%arg0: i32) -> (i32, i32) {
    %c0_i32 = arith.constant 0 : i32
    %c0_i32_0 = arith.constant 0 : i32
    return %arg0, %c0_i32 : i32, i32
  }
  func.func @transform_4(%arg0: i32) -> (i32, i32) {
    %c0_i32 = arith.constant 0 : i32
    %c0_i32_0 = arith.constant 0 : i32
    return %arg0, %c0_i32 : i32, i32
  }
  func.func @transform_5(%arg0: i32) -> (i32, i32) {
    %c0_i32 = arith.constant 0 : i32
    %c0_i32_0 = arith.constant 0 : i32
    return %arg0, %c0_i32 : i32, i32
  }
  func.func @transform_6(%arg0: i32) -> (i32, i32) {
    %c0_i32 = arith.constant 0 : i32
    %c0_i32_0 = arith.constant 0 : i32
    return %arg0, %c0_i32 : i32, i32
  }
}

</mosaic_0001>

<llo_original>
// kernel: tpu_custom_call.1
$region0: #{tpu_custom_call.1}
  #allocation0 [shape = 'u32[]', space=smem, size = 0x4, offset = 0x4, fixed_abs, tag = 'smem constant byte address 0x4 - core index']
  #allocation1 [shape = 'u32[144,128]{1,0:T(1,128)}', space=vmem, size = 0x12000, scoped, tag = 'internal scratch']
  %s0 = inlined_call_operand.hbm [shape: f32[4,256], index: 0, kind: input, shape index: {}]
  %s1 = inlined_call_operand.hbm [shape: f32[2,256], index: 1, kind: input, shape index: {}]
  %s2 = inlined_call_operand.hbm [shape: f32[2,256], index: 2, kind: input, shape index: {}]
  %s3 = inlined_call_operand.vmem [shape: f32[2,256], index: 3, kind: input, shape index: {}]
  %s4 = inlined_call_operand.hbm [shape: f32[2,256], index: 4, kind: input, shape index: {}]
  %s5 = inlined_call_operand.hbm [shape: f32[2,256], index: 5, kind: output, shape index: {0}]
  %s6 = inlined_call_operand.hbm [shape: f32[2,256], index: 6, kind: output, shape index: {1}]
  %7 = xla_tuple %s5, %s6
  %s8 = sld [smem:[#allocation0]]
  $region54: #{tpu_custom_call.1} parent=0
    _
  %s10 = ssub.s32 1, %s8
  %s11 = scalar_select 0, %s10, %s8
  $region1: #{tpu_custom_call.1} parent=0
    #allocation2 [shape = 'u8[4096]{0}', space=vmem, size = 0x1000, scoped, tag = 'input window, operand 0, single buffered']
    #allocation3 [shape = 's32[1]{0}', space=sflag, size = 0x4, scoped, tag = 'scoped memory for tpu_custom_call.1']
    #allocation4 [shape = 's32[1]{0}', space=sflag, size = 0x4, scoped, tag = 'scoped memory for tpu_custom_call.1']
    #allocation5 [shape = 'u8[2048]{0}', space=vmem, size = 0x800, scoped, tag = 'input window, operand 1, single buffered']
    #allocation6 [shape = 's32[1]{0}', space=sflag, size = 0x4, scoped, tag = 'scoped memory for tpu_custom_call.1']
    #allocation7 [shape = 'u8[2048]{0}', space=vmem, size = 0x800, scoped, tag = 'input window, operand 2, single buffered']
    #allocation8 [shape = 'u8[2048]{0}', space=vmem, size = 0x800, scoped, tag = 'input window, operand 4, single buffered']
    #allocation9 [shape = 's32[1]{0}', space=sflag, size = 0x4, scoped, tag = 'scoped memory for tpu_custom_call.1']
    #allocation10 [shape = 'u8[2048]{0}', space=vmem, size = 0x800, scoped, tag = 'output window, operand 0, single buffered']
    #allocation11 [shape = 'u8[2048]{0}', space=vmem, size = 0x800, scoped, tag = 'output window, operand 1, single buffered']
    #allocation12 [shape = 's32[1]{0}', space=sflag, size = 0x4, scoped, tag = 'scoped memory for tpu_custom_call.1']
    %12 = vsyncpa [#allocation3], 0
    %13 = vsyncpa [#allocation6], 0
    %14 = vsyncpa [#allocation9], 0
    %15 = vsyncpa [#allocation4], 0
    %16 = vsyncpa [#allocation12], 0
    // Predicated region
    $region2: #{tpu_custom_call.1} parent=1 // pred_check
      _
    $region3: #{tpu_custom_call.1} parent=1 // pred_check_branch
      %18 = sbr.rel (0) target = $region5
    $region4: #{tpu_custom_call.1} parent=1 // pred_region
      %s20 = ssub.s32 128, 128
      %21 = vsyncadd [#allocation3], %s20
      %s23 = sshll.u32 [#allocation2], 4
      %s24 = int_to_ptr.vmem [resolvable:$true] %s23
      %26 = dma.hbm_to_vmem [thread:$0]  %s0, 128, %s24, [#allocation3]
    $region5: #{tpu_custom_call.1} parent=1 // pred_fallthru
      _
    // Predicated region
    $region6: #{tpu_custom_call.1} parent=1 // pred_check
      _
    $region7: #{tpu_custom_call.1} parent=1 // pred_check_branch
      %28 = sbr.rel (0) target = $region9
    $region8: #{tpu_custom_call.1} parent=1 // pred_region
      %s30 = ssub.s32 64, 64
      %31 = vsyncadd [#allocation6], %s30
      %s33 = sshll.u32 [#allocation5], 4
      %s34 = int_to_ptr.vmem [resolvable:$true] %s33
      %36 = dma.hbm_to_vmem [thread:$0]  %s1, 64, %s34, [#allocation6]
    $region9: #{tpu_custom_call.1} parent=1 // pred_fallthru
      _
    // Predicated region
    $region10: #{tpu_custom_call.1} parent=1 // pred_check
      _
    $region11: #{tpu_custom_call.1} parent=1 // pred_check_branch
      %38 = sbr.rel (0) target = $region13
    $region12: #{tpu_custom_call.1} parent=1 // pred_region
      %s40 = ssub.s32 64, 64
      %41 = vsyncadd [#allocation6], %s40
      %s43 = sshll.u32 [#allocation7], 4
      %s44 = int_to_ptr.vmem [resolvable:$true] %s43
      %46 = dma.hbm_to_vmem [thread:$0]  %s2, 64, %s44, [#allocation6]
    $region13: #{tpu_custom_call.1} parent=1 // pred_fallthru
      _
    // Predicated region
    $region14: #{tpu_custom_call.1} parent=1 // pred_check
      _
    $region15: #{tpu_custom_call.1} parent=1 // pred_check_branch
      %48 = sbr.rel (0) target = $region17
    $region16: #{tpu_custom_call.1} parent=1 // pred_region
      _
    $region17: #{tpu_custom_call.1} parent=1 // pred_fallthru
      _
    // Predicated region
    $region18: #{tpu_custom_call.1} parent=1 // pred_check
      _
    $region19: #{tpu_custom_call.1} parent=1 // pred_check_branch
      %50 = sbr.rel (0) target = $region21
    $region20: #{tpu_custom_call.1} parent=1 // pred_region
      %s52 = ssub.s32 64, 64
      %53 = vsyncadd [#allocation9], %s52
      %s55 = sshll.u32 [#allocation8], 4
      %s56 = int_to_ptr.vmem [resolvable:$true] %s55
      %58 = dma.hbm_to_vmem [thread:$0]  %s4, 64, %s56, [#allocation9]
    $region21: #{tpu_custom_call.1} parent=1 // pred_fallthru
      _
    // Predicated region
    $region22: #{tpu_custom_call.1} parent=1 // pred_check
      _
    $region23: #{tpu_custom_call.1} parent=1 // pred_check_branch
      %60 = sbr.rel (0) target = $region25
    $region24: #{tpu_custom_call.1} parent=1 // pred_region
      %61 = dma.done [#allocation3], 128
    $region25: #{tpu_custom_call.1} parent=1 // pred_fallthru
      _
    // Predicated region
    $region26: #{tpu_custom_call.1} parent=1 // pred_check
      _
    $region27: #{tpu_custom_call.1} parent=1 // pred_check_branch
      %63 = sbr.rel (0) target = $region29
    $region28: #{tpu_custom_call.1} parent=1 // pred_region
      %64 = dma.done [#allocation6], 64
    $region29: #{tpu_custom_call.1} parent=1 // pred_fallthru
      _
    // Predicated region
    $region30: #{tpu_custom_call.1} parent=1 // pred_check
      _
    $region31: #{tpu_custom_call.1} parent=1 // pred_check_branch
      %66 = sbr.rel (0) target = $region33
    $region32: #{tpu_custom_call.1} parent=1 // pred_region
      %67 = dma.done [#allocation6], 64
    $region33: #{tpu_custom_call.1} parent=1 // pred_fallthru
      _
    // Predicated region
    $region34: #{tpu_custom_call.1} parent=1 // pred_check
      _
    $region35: #{tpu_custom_call.1} parent=1 // pred_check_branch
      %69 = sbr.rel (0) target = $region37
    $region36: #{tpu_custom_call.1} parent=1 // pred_region
      %70 = dma.done [#allocation9], 64
    $region37: #{tpu_custom_call.1} parent=1 // pred_fallthru
      _
    %v71 = vld [vmem:[#allocation5] sm:$0xf]
    %v72 = vld [vmem:[#allocation7] sm:$0xf]
    %v73 = vld [vmem:[%s3] sm:$0xf]
    %v74 = vld [vmem:[#allocation8] sm:$0xf]
    %v75 = vld [vmem:[#allocation2] ss:$4 sm:$0x3]
    %vm76 = vcmp.ne.f32.partialorder %v75, 0.0
    %s77 = scalar_lea.vmem [#allocation2], 1
    %v78 = vld [vmem:[%s77] ss:$4 sm:$0x3]
    %vm79 = vcmp.ne.f32.partialorder %v78, 0.0
    %s80 = scalar_lea.vmem [#allocation2], 2
    %v81 = vld [vmem:[%s80] ss:$4 sm:$0x3]
    %vm82 = vcmp.ne.f32.partialorder %v81, 0.0
    %s83 = scalar_lea.vmem [#allocation2], 3
    %v84 = vld [vmem:[%s83] ss:$4 sm:$0x3]
    %vm85 = vcmp.ne.f32.partialorder %v84, 0.0
    %v86 = vadd.f32 %v71, %v73
    %v87 = vadd.f32 %v72, %v74
    %v88 = vmul.f32 %v71, %v87
    %v89 = vmul.f32 %v72, 2.0
    %v90 = vmul.f32 %v89, %v73
    %v91 = vadd.f32 %v88, %v90
    %v92 = vmul.f32 %v71, %v91
    %v95 = vunpack.c.l.s4 1983009808
    %v96 = vunpack.c.0.s8 %v95
    %v97 = vlaneseq
    %v98 = vshrl.u32 %v97, 7
    %v99 = vsub.s32 %v96, %v98
    %v100 = vrot.slane %v86, %v99
    %v101 = vcombine.high %v100, %v100
    %104 = vrot.lane.b32.xlu0 %v100, 16
    %v105 = vpop.permute.xlu0 %104
    %106 = vrot.lane.b32.xlu0 %v101, 16
    %v107 = vpop.permute.xlu0 %106
    %v108 = vlaneseq
    %v109 = vand.u32 %v108, 127
    %vm110 = vcmp.lt.s32.totalorder %v109, 16
    %v111 = vsel %vm110, %v105, %v107
    %v112 = vsel %vm110, %v107, %v105
    %v113 = vsel %vm82, 1, 0
    %v114 = vlaneseq
    %v115 = vshrl.u32 %v114, 7
    %v116 = vsub.s32 0, %v115
    %v117 = vrot.slane %v113, %v116
    %v118 = vlaneseq
    %v119 = vshrl.u32 %v118, 7
    %v120 = vsub.s32 1, %v119
    %v121 = vrot.slane %v113, %v120
    %vm122 = vcmp.eq.s32.totalorder %v117, 1
    %vm123 = vcmp.eq.s32.totalorder %v121, 1
    %v124 = vsel %vm122, %v100, %v112
    %v125 = vsel %vm123, %v101, %v111
    %126 = vrot.lane.b32.xlu0 %v100, 112
    %v127 = vpop.permute.xlu0 %126
    %128 = vrot.lane.b32.xlu0 %v101, 112
    %v129 = vpop.permute.xlu0 %128
    %vm130 = vcmp.lt.s32.totalorder %v109, 112
    %v131 = vsel %vm130, %v127, %v129
    %v132 = vsel %vm130, %v129, %v127
    %v133 = vsel %vm85, 1, 0
    %v134 = vlaneseq
    %v135 = vshrl.u32 %v134, 7
    %v136 = vsub.s32 0, %v135
    %v137 = vrot.slane %v133, %v136
    %v138 = vlaneseq
    %v139 = vshrl.u32 %v138, 7
    %v140 = vsub.s32 1, %v139
    %v141 = vrot.slane %v133, %v140
    %vm142 = vcmp.eq.s32.totalorder %v137, 1
    %vm143 = vcmp.eq.s32.totalorder %v141, 1
    %v144 = vsel %vm142, %v100, %v131
    %v145 = vsel %vm143, %v101, %v132
    %146 = vrot.lane.b32.xlu0 %v100, 1
    %v147 = vpop.permute.xlu0 %146
    %148 = vrot.lane.b32.xlu0 %v101, 1
    %v149 = vpop.permute.xlu0 %148
    %vm150 = vcmp.lt.s32.totalorder %v109, 1
    %v151 = vsel %vm150, %v147, %v149
    %v152 = vsel %vm150, %v149, %v147
    %v153 = vsel %vm76, 1, 0
    %v154 = vlaneseq
    %v155 = vshrl.u32 %v154, 7
    %v156 = vsub.s32 0, %v155
    %v157 = vrot.slane %v153, %v156
    %v158 = vlaneseq
    %v159 = vshrl.u32 %v158, 7
    %v160 = vsub.s32 1, %v159
    %v161 = vrot.slane %v153, %v160
    %vm162 = vcmp.eq.s32.totalorder %v157, 1
    %vm163 = vcmp.eq.s32.totalorder %v161, 1
    %v164 = vsel %vm162, %v100, %v152
    %v165 = vsel %vm163, %v101, %v151
    %166 = vrot.lane.b32.xlu0 %v100, 127
    %v167 = vpop.permute.xlu0 %166
    %168 = vrot.lane.b32.xlu0 %v101, 127
    %v169 = vpop.permute.xlu0 %168
    %vm170 = vcmp.lt.s32.totalorder %v109, 127
    %v171 = vsel %vm170, %v167, %v169
    %v172 = vsel %vm170, %v169, %v167
    %v173 = vsel %vm79, 1, 0
    %v174 = vlaneseq
    %v175 = vshrl.u32 %v174, 7
    %v176 = vsub.s32 0, %v175
    %v177 = vrot.slane %v173, %v176
    %v178 = vlaneseq
    %v179 = vshrl.u32 %v178, 7
    %v180 = vsub.s32 1, %v179
    %v181 = vrot.slane %v173, %v180
    %vm182 = vcmp.eq.s32.totalorder %v177, 1
    %vm183 = vcmp.eq.s32.totalorder %v181, 1
    %v184 = vsel %vm182, %v100, %v171
    %v185 = vsel %vm183, %v101, %v172
    %v186 = vmul.f32 %v86, 4.0
    %v189 = vcombine.low %v124, %v125
    %v191 = vunpack.c.l.s4 1983009808
    %v192 = vunpack.c.0.s8 %v191
    %v193 = vlaneseq
    %v194 = vshrl.u32 %v193, 7
    %v195 = vsub.s32 %v192, %v194
    %v196 = vrot.slane %v189, %v195
    %v198 = vsub.f32 %v186, %v196
    %v201 = vcombine.low %v144, %v145
    %v203 = vunpack.c.l.s4 1983009808
    %v204 = vunpack.c.0.s8 %v203
    %v205 = vlaneseq
    %v206 = vshrl.u32 %v205, 7
    %v207 = vsub.s32 %v204, %v206
    %v208 = vrot.slane %v201, %v207
    %v210 = vsub.f32 %v198, %v208
    %v213 = vcombine.low %v164, %v165
    %v215 = vunpack.c.l.s4 1983009808
    %v216 = vunpack.c.0.s8 %v215
    %v217 = vlaneseq
    %v218 = vshrl.u32 %v217, 7
    %v219 = vsub.s32 %v216, %v218
    %v220 = vrot.slane %v213, %v219
    %v222 = vsub.f32 %v210, %v220
    %v225 = vcombine.low %v184, %v185
    %v227 = vunpack.c.l.s4 1983009808
    %v228 = vunpack.c.0.s8 %v227
    %v229 = vlaneseq
    %v230 = vshrl.u32 %v229, 7
    %v231 = vsub.s32 %v228, %v230
    %v232 = vrot.slane %v225, %v231
    %v234 = vsub.f32 %v222, %v232
    %v235 = vmul.f32 %v234, 0.961
    %v236 = vmul.f32 %v86, 0.105
    %v237 = vadd.f32 %v235, %v236
    %v238 = vsub.f32 %v237, %v92
    %239 = vst [vmem:[#allocation10] sm:$0xf] %v238
    %v242 = vunpack.c.l.s4 1983009808
    %v243 = vunpack.c.0.s8 %v242
    %v244 = vlaneseq
    %v245 = vshrl.u32 %v244, 7
    %v246 = vsub.s32 %v243, %v245
    %v247 = vrot.slane %v87, %v246
    %v248 = vcombine.high %v247, %v247
    %251 = vrot.lane.b32.xlu0 %v247, 16
    %v252 = vpop.permute.xlu0 %251
    %253 = vrot.lane.b32.xlu0 %v248, 16
    %v254 = vpop.permute.xlu0 %253
    %v255 = vsel %vm110, %v252, %v254
    %v256 = vsel %vm110, %v254, %v252
    %v257 = vsel %vm122, %v247, %v256
    %v258 = vsel %vm123, %v248, %v255
    %259 = vrot.lane.b32.xlu0 %v247, 112
    %v260 = vpop.permute.xlu0 %259
    %261 = vrot.lane.b32.xlu0 %v248, 112
    %v262 = vpop.permute.xlu0 %261
    %v263 = vsel %vm130, %v260, %v262
    %v264 = vsel %vm130, %v262, %v260
    %v265 = vsel %vm142, %v247, %v263
    %v266 = vsel %vm143, %v248, %v264
    %267 = vrot.lane.b32.xlu0 %v247, 1
    %v268 = vpop.permute.xlu0 %267
    %269 = vrot.lane.b32.xlu0 %v248, 1
    %v270 = vpop.permute.xlu0 %269
    %v271 = vsel %vm150, %v268, %v270
    %v272 = vsel %vm150, %v270, %v268
    %v273 = vsel %vm162, %v247, %v272
    %v274 = vsel %vm163, %v248, %v271
    %275 = vrot.lane.b32.xlu0 %v247, 127
    %v276 = vpop.permute.xlu0 %275
    %277 = vrot.lane.b32.xlu0 %v248, 127
    %v278 = vpop.permute.xlu0 %277
    %v279 = vsel %vm170, %v276, %v278
    %v280 = vsel %vm170, %v278, %v276
    %v281 = vsel %vm182, %v247, %v279
    %v282 = vsel %vm183, %v248, %v280
    %v283 = vmul.f32 %v87, 4.0
    %v286 = vcombine.low %v257, %v258
    %v288 = vunpack.c.l.s4 1983009808
    %v289 = vunpack.c.0.s8 %v288
    %v290 = vlaneseq
    %v291 = vshrl.u32 %v290, 7
    %v292 = vsub.s32 %v289, %v291
    %v293 = vrot.slane %v286, %v292
    %v295 = vsub.f32 %v283, %v293
    %v298 = vcombine.low %v265, %v266
    %v300 = vunpack.c.l.s4 1983009808
    %v301 = vunpack.c.0.s8 %v300
    %v302 = vlaneseq
    %v303 = vshrl.u32 %v302, 7
    %v304 = vsub.s32 %v301, %v303
    %v305 = vrot.slane %v298, %v304
    %v307 = vsub.f32 %v295, %v305
    %v310 = vcombine.low %v273, %v274
    %v312 = vunpack.c.l.s4 1983009808
    %v313 = vunpack.c.0.s8 %v312
    %v314 = vlaneseq
    %v315 = vshrl.u32 %v314, 7
    %v316 = vsub.s32 %v313, %v315
    %v317 = vrot.slane %v310, %v316
    %v319 = vsub.f32 %v307, %v317
    %v322 = vcombine.low %v281, %v282
    %v324 = vunpack.c.l.s4 1983009808
    %v325 = vunpack.c.0.s8 %v324
    %v326 = vlaneseq
    %v327 = vshrl.u32 %v326, 7
    %v328 = vsub.s32 %v325, %v327
    %v329 = vrot.slane %v322, %v328
    %v331 = vsub.f32 %v319, %v329
    %v332 = vmul.f32 %v331, 1.922
    %v333 = vsub.f32 %v87, 1.0
    %v334 = vmul.f32 %v333, 0.04
    %v335 = vadd.f32 %v332, %v334
    %v336 = vadd.f32 %v335, %v92
    %337 = vst [vmem:[#allocation11] sm:$0xf] %v336
    // Predicated region
    $region38: #{tpu_custom_call.1} parent=1 // pred_check
      _
    $region39: #{tpu_custom_call.1} parent=1 // pred_check_branch
      %339 = sbr.rel (0) target = $region41
    $region40: #{tpu_custom_call.1} parent=1 // pred_region
      %s341 = ssub.s32 64, 64
      %342 = vsyncadd [#allocation4], %s341
      %s344 = sshll.u32 [#allocation10], 4
      %s345 = int_to_ptr.vmem [resolvable:$true] %s344
      %347 = dma.vmem_to_hbm [thread:$0]  %s345, 64, %s5, [#allocation4]
    $region41: #{tpu_custom_call.1} parent=1 // pred_fallthru
      _
    // Predicated region
    $region42: #{tpu_custom_call.1} parent=1 // pred_check
      _
    $region43: #{tpu_custom_call.1} parent=1 // pred_check_branch
      %349 = sbr.rel (0) target = $region45
    $region44: #{tpu_custom_call.1} parent=1 // pred_region
      %s351 = ssub.s32 64, 64
      %352 = vsyncadd [#allocation12], %s351
      %s354 = sshll.u32 [#allocation11], 4
      %s355 = int_to_ptr.vmem [resolvable:$true] %s354
      %357 = dma.vmem_to_hbm [thread:$0]  %s355, 64, %s6, [#allocation12]
    $region45: #{tpu_custom_call.1} parent=1 // pred_fallthru
      _
    // Predicated region
    $region46: #{tpu_custom_call.1} parent=1 // pred_check
      _
    $region47: #{tpu_custom_call.1} parent=1 // pred_check_branch
      %359 = sbr.rel (0) target = $region49
    $region48: #{tpu_custom_call.1} parent=1 // pred_region
      %360 = dma.done [#allocation4], 64
    $region49: #{tpu_custom_call.1} parent=1 // pred_fallthru
      _
    // Predicated region
    $region50: #{tpu_custom_call.1} parent=1 // pred_check
      _
    $region51: #{tpu_custom_call.1} parent=1 // pred_check_branch
      %362 = sbr.rel (0) target = $region53
    $region52: #{tpu_custom_call.1} parent=1 // pred_region
      %363 = dma.done [#allocation12], 64
    $region53: #{tpu_custom_call.1} parent=1 // pred_fallthru
      _
    %364 = vsyncpa [#allocation3], 1
    %365 = vsyncpa [#allocation6], 1
    %366 = vsyncpa [#allocation9], 1
    %367 = vsyncpa [#allocation4], 1
    %368 = vsyncpa [#allocation12], 1

</llo_original>
